<compile_context>
chip_gen: v5e
topology: v5e:2x2
jax: 0.10.0
libtpu: 0.0.40
codegen_flags: <defaults>
</compile_context>

<pallas_src>
import functools

import jax
import jax.numpy as jnp
from jax.experimental import pallas as pl
from jax.experimental.pallas import tpu as pltpu

LANE = 128


def _round_up(n, m):
    return ((n + m - 1) // m) * m


# ----------------------------------------------------------------------------
# Kernel: one batch tile through all three layers, weights VMEM-resident.
# ----------------------------------------------------------------------------
def dqn_kernel(x_ref, w1_ref, b1_ref, w2_ref, b2_ref, w3_ref, b3_ref, o_ref):
    cdt = w2_ref.dtype                 # bf16 matmul dtype for layers 2/3
    n_out = o_ref.shape[-1]            # real (unpadded) number of Q-values

    # Layer 1: f32 matmul (K = n_in is tiny, exactly one f32 sublane tile).
    # Fused bias + ReLU + downcast so only the bf16 activation stays live.
    h1 = jnp.maximum(
        jnp.dot(x_ref[...], w1_ref[...], preferred_element_type=jnp.float32)
        + b1_ref[...], 0.0).astype(cdt)

    # Layer 2: bf16 MXU matmul, f32 accumulate/epilogue, fused downcast.
    h2 = jnp.maximum(
        jnp.dot(h1, w2_ref[...], preferred_element_type=jnp.float32)
        + b2_ref[...], 0.0).astype(cdt)

    # Output layer (ReLU kept: matches the PyTorch module's forward).
    y = jnp.maximum(
        jnp.dot(h2, w3_ref[...], preferred_element_type=jnp.float32)
        + b3_ref[...], 0.0)

    # Narrow store: only the real n_out Q-values hit HBM (padding lanes are
    # exact zeros through the ReLUs and are simply dropped here).
    o_ref[...] = y[:, :n_out].astype(o_ref.dtype)


# ----------------------------------------------------------------------------
# Parameter handling
# ----------------------------------------------------------------------------
def init_params(key, inputs, outputs, hidden=20):
    """Deterministic synthetic init (PyTorch-Linear-like uniform ranges).

    Returns logical (unpadded) params; weights stored as (in, out)."""
    ks = jax.random.split(key, 6)

    def lin(kw, kb, fan_in, fan_out):
        bound = 1.0 / jnp.sqrt(jnp.float32(fan_in))
        w = jax.random.uniform(kw, (fan_in, fan_out), jnp.float32, -bound, bound)
        b = jax.random.uniform(kb, (1, fan_out), jnp.float32, -bound, bound)
        return w, b

    w1, b1 = lin(ks[0], ks[1], inputs, hidden)
    w2, b2 = lin(ks[2], ks[3], hidden, hidden)
    w3, b3 = lin(ks[4], ks[5], hidden, outputs)
    return {"w1": w1, "b1": b1, "w2": w2, "b2": b2, "w3": w3, "b3": b3}


def pad_params(p, compute_dtype=jnp.bfloat16):
    """Zero-pad hidden/output feature dims to 128 lanes and cast the big
    weights to the bf16 matmul dtype.  Done ONCE outside the per-step path.
    The input-feature dim of w1 is left at its natural (tiny) size so x never
    needs padding, and w1 stays f32 (it is only a few KB)."""
    def pad2(a, rows, cols, dtype):
        out = jnp.zeros((rows, cols), dtype)
        return out.at[: a.shape[0], : a.shape[1]].set(a.astype(dtype))

    n_in, hid = p["w1"].shape
    n_out = p["w3"].shape[1]
    hid_p = _round_up(hid, LANE)
    out_p = _round_up(n_out, LANE)
    return {
        "w1": pad2(p["w1"], n_in, hid_p, jnp.float32),
        "b1": pad2(p["b1"], 1, hid_p, jnp.float32),
        "w2": pad2(p["w2"], hid_p, hid_p, compute_dtype),
        "b2": pad2(p["b2"], 1, hid_p, jnp.float32),
        "w3": pad2(p["w3"], hid_p, out_p, compute_dtype),
        "b3": pad2(p["b3"], 1, out_p, jnp.float32),
    }


# ----------------------------------------------------------------------------
# Forward wrapper: batch-tiled pallas_call with VMEM-resident weights.
# ----------------------------------------------------------------------------
def dqn_forward(x, padded_params, *, n_outputs, block_b=1024):
    """x: (B, inputs) float32, unpadded.  padded_params: pad_params() output.
    Returns (B, n_outputs) float32 Q-values."""
    p = padded_params
    B, n_in = x.shape
    hid_p = p["w2"].shape[0]
    out_p = p["w3"].shape[1]

    # Batch tile: big (amortize ~0.35us per grid step), multiple of 8 rows.
    tb = min(_round_up(block_b, 8), _round_up(B, 8))
    # v7x megacore: for big batches make sure the grid has >= 2 steps so the
    # "parallel" batch axis can split across the two TensorCores.
    if B >= 1024:
        tb = min(tb, _round_up(pl.cdiv(B, 2), 8))

    grid = (pl.cdiv(B, tb),)
    const = lambda i: (0, 0)          # weights/biases: resident across the grid
    batched = lambda i: (i, 0)        # activation stream: tiled over the batch

    out = pl.pallas_call(
        dqn_kernel,
        out_shape=jax.ShapeDtypeStruct((B, n_outputs), jnp.float32),
        grid=grid,
        in_specs=[
            pl.BlockSpec((tb, n_in), batched),      # x: natural narrow last dim
            pl.BlockSpec((n_in, hid_p), const),     # w1 (f32)
            pl.BlockSpec((1, hid_p), const),        # b1
            pl.BlockSpec((hid_p, hid_p), const),    # w2 (bf16)
            pl.BlockSpec((1, hid_p), const),        # b2
            pl.BlockSpec((hid_p, out_p), const),    # w3 (bf16)
            pl.BlockSpec((1, out_p), const),        # b3
        ],
        out_specs=pl.BlockSpec((tb, n_outputs), batched),   # narrow output
        compiler_params=pltpu.CompilerParams(
            dimension_semantics=("parallel",)),
    )(x, p["w1"], p["b1"], p["w2"], p["b2"], p["w3"], p["b3"])

    return out


# ----------------------------------------------------------------------------
# References
# ----------------------------------------------------------------------------
def dqn_reference_f32(x, p):
    h1 = jnp.maximum(x @ p["w1"] + p["b1"], 0.0)
    h2 = jnp.maximum(h1 @ p["w2"] + p["b2"], 0.0)
    return jnp.maximum(h2 @ p["w3"] + p["b3"], 0.0)


def dqn_reference_matched(x, pp, n_outputs):
    """Same dtype flow as the kernel (f32 layer-1, bf16 layers 2/3, f32 acc)."""
    cdt = pp["w2"].dtype
    h1 = jnp.maximum(
        jnp.dot(x, pp["w1"], preferred_element_type=jnp.float32) + pp["b1"],
        0.0).astype(cdt)
    h2 = jnp.maximum(
        jnp.dot(h1, pp["w2"], preferred_element_type=jnp.float32) + pp["b2"],
        0.0).astype(cdt)
    y = jnp.maximum(
        jnp.dot(h2, pp["w3"], preferred_element_type=jnp.float32) + pp["b3"],
        0.0)
    return y[:, :n_outputs]


if __name__ == "__main__":
    key = jax.random.PRNGKey(0)
    k_x, k_p = jax.random.split(key)

    batch, inputs, outputs = 32, 8, 4   # small shapes consistent with DQN(inputs, outputs)
    x = jax.random.normal(k_x, (batch, inputs), jnp.float32)

    params = init_params(k_p, inputs, outputs)          # logical (in, out) layout
    padded = pad_params(params)                         # padded + bf16, done once

    fwd = jax.jit(functools.partial(dqn_forward, n_outputs=outputs))
    out = jax.block_until_ready(fwd(x, padded))

    assert out.shape == (batch, outputs)

    # Check against a dtype-matched JAX reference (bf16 layers 2/3).
    ref_matched = dqn_reference_matched(x, padded, outputs)
    assert jnp.allclose(out, ref_matched, atol=1e-2, rtol=1e-2), \
        "mismatch vs matched-precision reference"

    # Sanity check against the full-fp32 reference (bf16 rounding tolerance).
    ref_f32 = dqn_reference_f32(x, params)
    assert jnp.allclose(out, ref_f32, atol=5e-2, rtol=5e-2), \
        "mismatch vs fp32 reference"

    print("KERNEL_OK")
</pallas_src>

<mosaic_0001>
module attributes {stable_mosaic.version = 11 : i64} {
  func.func @dqn_kernel(%arg0: i32, %arg1: memref<32x8xf32, #tpu.memory_space<vmem>>, %arg2: memref<8x128xf32, #tpu.memory_space<vmem>>, %arg3: memref<1x128xf32, #tpu.memory_space<vmem>>, %arg4: memref<128x128xbf16, #tpu.memory_space<vmem>>, %arg5: memref<1x128xf32, #tpu.memory_space<vmem>>, %arg6: memref<128x128xbf16, #tpu.memory_space<vmem>>, %arg7: memref<1x128xf32, #tpu.memory_space<vmem>>, %arg8: memref<32x4xf32, #tpu.memory_space<vmem>>) attributes {dimension_semantics = [#tpu.dimension_semantics<parallel>], iteration_bounds = array<i64: 1>, scalar_prefetch = 0 : i64, scratch_operands = 0 : i64, tpu.core_type = #tpu.core_type<tc>, window_params = [{transform_indices = @transform_0, window_bounds = array<i64: 32, 8>}, {pipeline_mode = #tpu.pipeline_mode<synchronous>, transform_indices = @transform_1, window_bounds = array<i64: 8, 128>}, {pipeline_mode = #tpu.pipeline_mode<synchronous>, transform_indices = @transform_2, window_bounds = array<i64: 1, 128>}, {pipeline_mode = #tpu.pipeline_mode<synchronous>, transform_indices = @transform_3, window_bounds = array<i64: 128, 128>}, {pipeline_mode = #tpu.pipeline_mode<synchronous>, transform_indices = @transform_4, window_bounds = array<i64: 1, 128>}, {pipeline_mode = #tpu.pipeline_mode<synchronous>, transform_indices = @transform_5, window_bounds = array<i64: 128, 128>}, {pipeline_mode = #tpu.pipeline_mode<synchronous>, transform_indices = @transform_6, window_bounds = array<i64: 1, 128>}, {transform_indices = @transform_7, window_bounds = array<i64: 32, 4>}]} {
    %c0 = arith.constant 0 : index
    %c0_0 = arith.constant 0 : index
    %0 = vector.load %arg1[%c0, %c0_0] : memref<32x8xf32, #tpu.memory_space<vmem>>, vector<32x8xf32>
    %c0_1 = arith.constant 0 : index
    %c0_2 = arith.constant 0 : index
    %1 = vector.load %arg2[%c0_1, %c0_2] : memref<8x128xf32, #tpu.memory_space<vmem>>, vector<8x128xf32>
    %cst = arith.constant dense<0.000000e+00> : vector<32x128xf32>
    %2 = tpu.matmul %0, %1, %cst {dimension_numbers = #tpu.dot_dimension_numbers<[1], [0], [0], [1], [0, 0, 1, 1], [], []>} : vector<32x8xf32>, vector<8x128xf32>, vector<32x128xf32> -> vector<32x128xf32>
    %c0_3 = arith.constant 0 : index
    %c0_4 = arith.constant 0 : index
    %3 = vector.load %arg3[%c0_3, %c0_4] : memref<1x128xf32, #tpu.memory_space<vmem>>, vector<1x128xf32>
    %4 = vector.broadcast %3 : vector<1x128xf32> to vector<32x128xf32>
    %5 = arith.addf %2, %4 : vector<32x128xf32>
    %cst_5 = arith.constant 0.000000e+00 : f32
    %6 = vector.broadcast %cst_5 : f32 to vector<32x128xf32>
    %7 = arith.maximumf %5, %6 : vector<32x128xf32>
    %8 = arith.truncf %7 : vector<32x128xf32> to vector<32x128xbf16>
    %c0_6 = arith.constant 0 : index
    %c0_7 = arith.constant 0 : index
    %9 = vector.load %arg4[%c0_6, %c0_7] : memref<128x128xbf16, #tpu.memory_space<vmem>>, vector<128x128xbf16>
    %cst_8 = arith.constant dense<0.000000e+00> : vector<32x128xf32>
    %10 = tpu.matmul %8, %9, %cst_8 {dimension_numbers = #tpu.dot_dimension_numbers<[1], [0], [0], [1], [0, 0, 1, 1], [], []>} : vector<32x128xbf16>, vector<128x128xbf16>, vector<32x128xf32> -> vector<32x128xf32>
    %c0_9 = arith.constant 0 : index
    %c0_10 = arith.constant 0 : index
    %11 = vector.load %arg5[%c0_9, %c0_10] : memref<1x128xf32, #tpu.memory_space<vmem>>, vector<1x128xf32>
    %12 = vector.broadcast %11 : vector<1x128xf32> to vector<32x128xf32>
    %13 = arith.addf %10, %12 : vector<32x128xf32>
    %cst_11 = arith.constant 0.000000e+00 : f32
    %14 = vector.broadcast %cst_11 : f32 to vector<32x128xf32>
    %15 = arith.maximumf %13, %14 : vector<32x128xf32>
    %16 = arith.truncf %15 : vector<32x128xf32> to vector<32x128xbf16>
    %c0_12 = arith.constant 0 : index
    %c0_13 = arith.constant 0 : index
    %17 = vector.load %arg6[%c0_12, %c0_13] : memref<128x128xbf16, #tpu.memory_space<vmem>>, vector<128x128xbf16>
    %cst_14 = arith.constant dense<0.000000e+00> : vector<32x128xf32>
    %18 = tpu.matmul %16, %17, %cst_14 {dimension_numbers = #tpu.dot_dimension_numbers<[1], [0], [0], [1], [0, 0, 1, 1], [], []>} : vector<32x128xbf16>, vector<128x128xbf16>, vector<32x128xf32> -> vector<32x128xf32>
    %c0_15 = arith.constant 0 : index
    %c0_16 = arith.constant 0 : index
    %19 = vector.load %arg7[%c0_15, %c0_16] : memref<1x128xf32, #tpu.memory_space<vmem>>, vector<1x128xf32>
    %20 = vector.broadcast %19 : vector<1x128xf32> to vector<32x128xf32>
    %21 = arith.addf %18, %20 : vector<32x128xf32>
    %cst_17 = arith.constant 0.000000e+00 : f32
    %22 = vector.broadcast %cst_17 : f32 to vector<32x128xf32>
    %23 = arith.maximumf %21, %22 : vector<32x128xf32>
    %24 = vector.extract_strided_slice %23 {offsets = [0, 0], sizes = [32, 4], strides = [1, 1]} : vector<32x128xf32> to vector<32x4xf32>
    %c0_18 = arith.constant 0 : index
    %c0_19 = arith.constant 0 : index
    %25 = vector.load %arg8[%c0_18, %c0_19] : memref<32x4xf32, #tpu.memory_space<vmem>>, vector<32x4xf32>
    tpu.vector_store %arg8[%c0_18, %c0_19], %24 {strides = array<i32>} : memref<32x4xf32, #tpu.memory_space<vmem>>, vector<32x4xf32>,
    return
  }
  func.func @transform_0(%arg0: i32) -> (i32, i32) {
    %c0_i32 = arith.constant 0 : i32
    %c0_i32_0 = arith.constant 0 : i32
    return %arg0, %c0_i32 : i32, i32
  }
  func.func @transform_1(%arg0: i32) -> (i32, i32) {
    %c0_i32 = arith.constant 0 : i32
    %c0_i32_0 = arith.constant 0 : i32
    %c0_i32_1 = arith.constant 0 : i32
    return %c0_i32, %c0_i32_0 : i32, i32
  }
  func.func @transform_2(%arg0: i32) -> (i32, i32) {
    %c0_i32 = arith.constant 0 : i32
    %c0_i32_0 = arith.constant 0 : i32
    %c0_i32_1 = arith.constant 0 : i32
    return %c0_i32, %c0_i32_0 : i32, i32
  }
  func.func @transform_3(%arg0: i32) -> (i32, i32) {
    %c0_i32 = arith.constant 0 : i32
    %c0_i32_0 = arith.constant 0 : i32
    %c0_i32_1 = arith.constant 0 : i32
    return %c0_i32, %c0_i32_0 : i32, i32
  }
  func.func @transform_4(%arg0: i32) -> (i32, i32) {
    %c0_i32 = arith.constant 0 : i32
    %c0_i32_0 = arith.constant 0 : i32
    %c0_i32_1 = arith.constant 0 : i32
    return %c0_i32, %c0_i32_0 : i32, i32
  }
  func.func @transform_5(%arg0: i32) -> (i32, i32) {
    %c0_i32 = arith.constant 0 : i32
    %c0_i32_0 = arith.constant 0 : i32
    %c0_i32_1 = arith.constant 0 : i32
    return %c0_i32, %c0_i32_0 : i32, i32
  }
  func.func @transform_6(%arg0: i32) -> (i32, i32) {
    %c0_i32 = arith.constant 0 : i32
    %c0_i32_0 = arith.constant 0 : i32
    %c0_i32_1 = arith.constant 0 : i32
    return %c0_i32, %c0_i32_0 : i32, i32
  }
  func.func @transform_7(%arg0: i32) -> (i32, i32) {
    %c0_i32 = arith.constant 0 : i32
    %c0_i32_0 = arith.constant 0 : i32
    return %arg0, %c0_i32 : i32, i32
  }
}

</mosaic_0001>

<llo_original>
// kernel: dqn_forward.1
$region0: #{dqn_forward.1}
  #allocation0 [shape = 'u32[]', space=smem, size = 0x4, offset = 0x4, fixed_abs, tag = 'smem constant byte address 0x4 - core index']
  #allocation1 [shape = 'u32[72,128]{1,0:T(1,128)}', space=vmem, size = 0x9000, scoped, tag = 'internal scratch']
  %s0 = inlined_call_operand.vmem [shape: f32[32,8], index: 0, kind: input, shape index: {}]
  %s1 = inlined_call_operand.vmem [shape: f32[8,128], index: 1, kind: input, shape index: {}]
  %s2 = inlined_call_operand.vmem [shape: f32[1,128], index: 2, kind: input, shape index: {}]
  %s3 = inlined_call_operand.hbm [shape: bf16[128,128], index: 3, kind: input, shape index: {}]
  %s4 = inlined_call_operand.vmem [shape: f32[1,128], index: 4, kind: input, shape index: {}]
  %s5 = inlined_call_operand.hbm [shape: bf16[128,128], index: 5, kind: input, shape index: {}]
  %s6 = inlined_call_operand.vmem [shape: f32[1,128], index: 6, kind: input, shape index: {}]
  %s7 = inlined_call_operand.vmem [shape: f32[32,4], index: 7, kind: output, shape index: {}]
  %s8 = sld [smem:[#allocation0]]
  $region46: #{dqn_forward.1} parent=0
    _
  %s10 = ssub.s32 1, %s8
  %s11 = scalar_select 0, %s10, %s8
  $region1: #{dqn_forward.1} parent=0
    #allocation2 [shape = 'u8[32768]{0}', space=vmem, size = 0x8000, scoped, tag = 'input window, operand 3, single buffered']
    #allocation3 [shape = 's32[1]{0}', space=sflag, size = 0x4, scoped, tag = 'scoped memory for dqn_forward.1']
    #allocation4 [shape = 'u8[32768]{0}', space=vmem, size = 0x8000, scoped, tag = 'input window, operand 5, single buffered']
    #allocation5 [shape = 's32[1]{0}', space=sflag, size = 0x4, scoped, tag = 'scoped memory for dqn_forward.1']
    %12 = vsyncpa [#allocation3], 0
    %13 = vsyncpa [#allocation5], 0
    // Predicated region
    $region2: #{dqn_forward.1} parent=1 // pred_check
      _
    $region3: #{dqn_forward.1} parent=1 // pred_check_branch
      %15 = sbr.rel (0) target = $region5
    $region4: #{dqn_forward.1} parent=1 // pred_region
      _
    $region5: #{dqn_forward.1} parent=1 // pred_fallthru
      _
    // Predicated region
    $region6: #{dqn_forward.1} parent=1 // pred_check
      _
    $region7: #{dqn_forward.1} parent=1 // pred_check_branch
      %17 = sbr.rel (0) target = $region9
    $region8: #{dqn_forward.1} parent=1 // pred_region
      _
    $region9: #{dqn_forward.1} parent=1 // pred_fallthru
      _
    // Predicated region
    $region10: #{dqn_forward.1} parent=1 // pred_check
      _
    $region11: #{dqn_forward.1} parent=1 // pred_check_branch
      %19 = sbr.rel (0) target = $region13
    $region12: #{dqn_forward.1} parent=1 // pred_region
      _
    $region13: #{dqn_forward.1} parent=1 // pred_fallthru
      _
    // Predicated region
    $region14: #{dqn_forward.1} parent=1 // pred_check
      _
    $region15: #{dqn_forward.1} parent=1 // pred_check_branch
      %21 = sbr.rel (0) target = $region17
    $region16: #{dqn_forward.1} parent=1 // pred_region
      %23 = vsyncadd [#allocation3], 0
      %s24 = sshll.u32 %s3, 4
      %s25 = int_to_ptr.hbm [resolvable:$true] %s24
      %s26 = sshll.u32 [#allocation2], 4
      %s27 = int_to_ptr.vmem [resolvable:$true] %s26
      %32 = dma.hbm_to_vmem [thread:$0]  %s25, 1024, %s27, [#allocation3], 64, 64, 4
    $region17: #{dqn_forward.1} parent=1 // pred_fallthru
      _
    // Predicated region
    $region18: #{dqn_forward.1} parent=1 // pred_check
      _
    $region19: #{dqn_forward.1} parent=1 // pred_check_branch
      %34 = sbr.rel (0) target = $region21
    $region20: #{dqn_forward.1} parent=1 // pred_region
      _
    $region21: #{dqn_forward.1} parent=1 // pred_fallthru
      _
    // Predicated region
    $region22: #{dqn_forward.1} parent=1 // pred_check
      _
    $region23: #{dqn_forward.1} parent=1 // pred_check_branch
      %36 = sbr.rel (0) target = $region25
    $region24: #{dqn_forward.1} parent=1 // pred_region
      %38 = vsyncadd [#allocation5], 0
      %s39 = sshll.u32 %s5, 4
      %s40 = int_to_ptr.hbm [resolvable:$true] %s39
      %s41 = sshll.u32 [#allocation4], 4
      %s42 = int_to_ptr.vmem [resolvable:$true] %s41
      %47 = dma.hbm_to_vmem [thread:$0]  %s40, 1024, %s42, [#allocation5], 64, 64, 4
    $region25: #{dqn_forward.1} parent=1 // pred_fallthru
      _
    // Predicated region
    $region26: #{dqn_forward.1} parent=1 // pred_check
      _
    $region27: #{dqn_forward.1} parent=1 // pred_check_branch
      %49 = sbr.rel (0) target = $region29
    $region28: #{dqn_forward.1} parent=1 // pred_region
      _
    $region29: #{dqn_forward.1} parent=1 // pred_fallthru
      _
    // Predicated region
    $region30: #{dqn_forward.1} parent=1 // pred_check
      _
    $region31: #{dqn_forward.1} parent=1 // pred_check_branch
      %51 = sbr.rel (0) target = $region33
    $region32: #{dqn_forward.1} parent=1 // pred_region
      %53 = dma.done [#allocation3], 1024
    $region33: #{dqn_forward.1} parent=1 // pred_fallthru
      _
    // Predicated region
    $region34: #{dqn_forward.1} parent=1 // pred_check
      _
    $region35: #{dqn_forward.1} parent=1 // pred_check_branch
      %55 = sbr.rel (0) target = $region37
    $region36: #{dqn_forward.1} parent=1 // pred_region
      %57 = dma.done [#allocation5], 1024
    $region37: #{dqn_forward.1} parent=1 // pred_fallthru
      _
    %v58 = vld [vmem:[%s0] sm:$0xff]
    %v59 = vld [vmem:[%s0 + $0x8] sm:$0xff]
    %v60 = vld [vmem:[%s0 + $0x10] sm:$0xff]
    %v61 = vld [vmem:[%s0 + $0x18] sm:$0xff]
    %v62 = vld [vmem:[%s1] sm:$0xff]
    %v63 = vld [vmem:[%s2] sm:$0x1]
    %v65 = vperm.slane %v63, 0
    %vm67 = vcmask 64512
    %v69 = vsel %vm67, %v58, 0
    %v72 = vsel %vm67, %v59, 0
    %v75 = vsel %vm67, %v60, 0
    %v78 = vsel %vm67, %v61, 0
    %80 = vmatpush.msra.mxu0 0.0
    %81 = vmatpush.msra.mxu0 0.0
    %82 = vmatpush.msra.mxu0 0.0
    %83 = vmatpush.msra.mxu0 0.0
    %84 = vmatpush.msra.mxu0 0.0
    %85 = vmatpush.msra.mxu0 0.0
    %86 = vmatpush.msra.mxu0 0.0
    %87 = vmatpush.msra.mxu0 0.0
    %88 = vmatpush.msra.mxu0 0.0
    %89 = vmatpush.msra.mxu0 0.0
    %90 = vmatpush.msra.mxu0 0.0
    %91 = vmatpush.msra.mxu0 0.0
    %92 = vmatpush.msra.mxu0 0.0
    %93 = vmatpush.msra.mxu0 0.0
    %94 = vmatpush.msra.mxu0 0.0
    %95 = vmatpush.msra.mxu0 %v62
    %96 = vmatmul.f32.gmra.mxu0 %v69
    %v97 = vpop.f32.mrf.mxu0
    %v98 = vadd.f32 %v65, %v97
    %99 = vmatmul.f32.gmra.mxu0 %v72
    %v100 = vpop.f32.mrf.mxu0
    %v101 = vadd.f32 %v65, %v100
    %102 = vmatmul.f32.gmra.mxu0 %v75
    %v103 = vpop.f32.mrf.mxu0
    %v104 = vadd.f32 %v65, %v103
    %105 = vmatmul.f32.gmra.mxu0 %v78
    %v106 = vpop.f32.mrf.mxu0
    %v107 = vadd.f32 %v65, %v106
    %108 = vdwg.mxu0
    %v109 = vmax.f32 %v98, 0.0
    %v110 = vmax.f32 %v101, 0.0
    %v111 = vmax.f32 %v104, 0.0
    %v112 = vmax.f32 %v107, 0.0
    %v113 = vpack.c.bf16 %v110, %v109
    %v114 = vpack.c.bf16 %v112, %v111
    %v115 = vld [vmem:[#allocation2] sm:$0xf]
    %v116 = vld [vmem:[#allocation2 + $0x4] sm:$0xf]
    %v117 = vld [vmem:[#allocation2 + $0x8] sm:$0xf]
    %v118 = vld [vmem:[#allocation2 + $0xc] sm:$0xf]
    %v119 = vld [vmem:[#allocation2 + $0x10] sm:$0xf]
    %v120 = vld [vmem:[#allocation2 + $0x14] sm:$0xf]
    %v121 = vld [vmem:[#allocation2 + $0x18] sm:$0xf]
    %v122 = vld [vmem:[#allocation2 + $0x1c] sm:$0xf]
    %v123 = vld [vmem:[#allocation2 + $0x20] sm:$0xf]
    %v124 = vld [vmem:[#allocation2 + $0x24] sm:$0xf]
    %v125 = vld [vmem:[#allocation2 + $0x28] sm:$0xf]
    %v126 = vld [vmem:[#allocation2 + $0x2c] sm:$0xf]
    %v127 = vld [vmem:[#allocation2 + $0x30] sm:$0xf]
    %v128 = vld [vmem:[#allocation2 + $0x34] sm:$0xf]
    %v129 = vld [vmem:[#allocation2 + $0x38] sm:$0xf]
    %v130 = vld [vmem:[#allocation2 + $0x3c] sm:$0xf]
    %v131 = vld [vmem:[%s4] sm:$0x1]
    %v133 = vperm.slane %v131, 0
    %v151 = vunpack.c.l.b16 %v115
    %v152 = vunpack.c.l.b16 %v116
    %v153 = vunpack.c.l.b16 %v117
    %v154 = vunpack.c.l.b16 %v118
    %v155 = vunpack.c.l.b16 %v119
    %v156 = vunpack.c.l.b16 %v120
    %v157 = vunpack.c.l.b16 %v121
    %v158 = vunpack.c.l.b16 %v122
    %v159 = vunpack.c.l.b16 %v123
    %v160 = vunpack.c.l.b16 %v124
    %v161 = vunpack.c.l.b16 %v125
    %v162 = vunpack.c.l.b16 %v126
    %v163 = vunpack.c.l.b16 %v127
    %v164 = vunpack.c.l.b16 %v128
    %v165 = vunpack.c.l.b16 %v129
    %v166 = vunpack.c.l.b16 %v130
    %v167 = vpack.c.b16 %v152, %v151
    %v168 = vpack.c.b16 %v154, %v153
    %v169 = vpack.c.b16 %v156, %v155
    %v170 = vpack.c.b16 %v158, %v157
    %v171 = vpack.c.b16 %v160, %v159
    %v172 = vpack.c.b16 %v162, %v161
    %v173 = vpack.c.b16 %v164, %v163
    %v174 = vpack.c.b16 %v166, %v165
    %183 = vmatpush.bf16.msra.mxu0 %v174
    %184 = vmatpush.bf16.msra.mxu0 %v173
    %185 = vmatpush.bf16.msra.mxu0 %v172
    %186 = vmatpush.bf16.msra.mxu0 %v171
    %187 = vmatpush.bf16.msra.mxu0 %v170
    %188 = vmatpush.bf16.msra.mxu0 %v169
    %189 = vmatpush.bf16.msra.mxu0 %v168
    %190 = vmatpush.bf16.msra.mxu0 %v167
    %191 = vmatmul.bf16.gmra.mxu0 %v113
    %v192 = vpop.f32.mrf.mxu0
    %v193 = vadd.f32 %v133, %v192
    %v194 = vpop.f32.mrf.mxu0
    %v195 = vadd.f32 %v133, %v194
    %196 = vmatmul.bf16.gmra.mxu0 %v114
    %v197 = vpop.f32.mrf.mxu0
    %v198 = vadd.f32 %v133, %v197
    %v199 = vpop.f32.mrf.mxu0
    %v200 = vadd.f32 %v133, %v199
    %201 = vdwg.mxu0
    %v202 = vmax.f32 %v193, 0.0
    %v203 = vmax.f32 %v195, 0.0
    %v204 = vmax.f32 %v198, 0.0
    %v205 = vmax.f32 %v200, 0.0
    %v206 = vpack.c.bf16 %v203, %v202
    %v207 = vpack.c.bf16 %v205, %v204
    %v208 = vld [vmem:[#allocation4] sm:$0xf]
    %v209 = vld [vmem:[#allocation4 + $0x4] sm:$0xf]
    %v210 = vld [vmem:[#allocation4 + $0x8] sm:$0xf]
    %v211 = vld [vmem:[#allocation4 + $0xc] sm:$0xf]
    %v212 = vld [vmem:[#allocation4 + $0x10] sm:$0xf]
    %v213 = vld [vmem:[#allocation4 + $0x14] sm:$0xf]
    %v214 = vld [vmem:[#allocation4 + $0x18] sm:$0xf]
    %v215 = vld [vmem:[#allocation4 + $0x1c] sm:$0xf]
    %v216 = vld [vmem:[#allocation4 + $0x20] sm:$0xf]
    %v217 = vld [vmem:[#allocation4 + $0x24] sm:$0xf]
    %v218 = vld [vmem:[#allocation4 + $0x28] sm:$0xf]
    %v219 = vld [vmem:[#allocation4 + $0x2c] sm:$0xf]
    %v220 = vld [vmem:[#allocation4 + $0x30] sm:$0xf]
    %v221 = vld [vmem:[#allocation4 + $0x34] sm:$0xf]
    %v222 = vld [vmem:[#allocation4 + $0x38] sm:$0xf]
    %v223 = vld [vmem:[#allocation4 + $0x3c] sm:$0xf]
    %v224 = vld [vmem:[%s6] sm:$0x1]
    %v226 = vperm.slane %v224, 0
    %v244 = vunpack.c.l.b16 %v208
    %v245 = vunpack.c.l.b16 %v209
    %v246 = vunpack.c.l.b16 %v210
    %v247 = vunpack.c.l.b16 %v211
    %v248 = vunpack.c.l.b16 %v212
    %v249 = vunpack.c.l.b16 %v213
    %v250 = vunpack.c.l.b16 %v214
    %v251 = vunpack.c.l.b16 %v215
    %v252 = vunpack.c.l.b16 %v216
    %v253 = vunpack.c.l.b16 %v217
    %v254 = vunpack.c.l.b16 %v218
    %v255 = vunpack.c.l.b16 %v219
    %v256 = vunpack.c.l.b16 %v220
    %v257 = vunpack.c.l.b16 %v221
    %v258 = vunpack.c.l.b16 %v222
    %v259 = vunpack.c.l.b16 %v223
    %v260 = vpack.c.b16 %v245, %v244
    %v261 = vpack.c.b16 %v247, %v246
    %v262 = vpack.c.b16 %v249, %v248
    %v263 = vpack.c.b16 %v251, %v250
    %v264 = vpack.c.b16 %v253, %v252
    %v265 = vpack.c.b16 %v255, %v254
    %v266 = vpack.c.b16 %v257, %v256
    %v267 = vpack.c.b16 %v259, %v258
    %276 = vmatpush.bf16.msra.mxu0 %v267
    %277 = vmatpush.bf16.msra.mxu0 %v266
    %278 = vmatpush.bf16.msra.mxu0 %v265
    %279 = vmatpush.bf16.msra.mxu0 %v264
    %280 = vmatpush.bf16.msra.mxu0 %v263
    %281 = vmatpush.bf16.msra.mxu0 %v262
    %282 = vmatpush.bf16.msra.mxu0 %v261
    %283 = vmatpush.bf16.msra.mxu0 %v260
    %284 = vmatmul.bf16.gmra.mxu0 %v206
    %v285 = vpop.f32.mrf.mxu0
    %v286 = vadd.f32 %v226, %v285
    %v287 = vpop.f32.mrf.mxu0
    %v288 = vadd.f32 %v226, %v287
    %289 = vmatmul.bf16.gmra.mxu0 %v207
    %v290 = vpop.f32.mrf.mxu0
    %v291 = vadd.f32 %v226, %v290
    %v292 = vpop.f32.mrf.mxu0
    %v293 = vadd.f32 %v226, %v292
    %294 = vdwg.mxu0
    %v295 = vmax.f32 %v286, 0.0
    %v296 = vmax.f32 %v288, 0.0
    %v297 = vmax.f32 %v291, 0.0
    %v298 = vmax.f32 %v293, 0.0
    %vm299 = vcmask 31744
    %300 = vst.msk [vmem:[%s7] sm:$0xff] %vm299, %v295
    %301 = vst.msk [vmem:[%s7 + $0x8] sm:$0xff] %vm299, %v296
    %302 = vst.msk [vmem:[%s7 + $0x10] sm:$0xff] %vm299, %v297
    %303 = vst.msk [vmem:[%s7 + $0x18] sm:$0xff] %vm299, %v298
    // Predicated region
    $region38: #{dqn_forward.1} parent=1 // pred_check
      _
    $region39: #{dqn_forward.1} parent=1 // pred_check_branch
      %305 = sbr.rel (0) target = $region41
    $region40: #{dqn_forward.1} parent=1 // pred_region
      _
    $region41: #{dqn_forward.1} parent=1 // pred_fallthru
      _
    // Predicated region
    $region42: #{dqn_forward.1} parent=1 // pred_check
      _
    $region43: #{dqn_forward.1} parent=1 // pred_check_branch
      %307 = sbr.rel (0) target = $region45
    $region44: #{dqn_forward.1} parent=1 // pred_region
      _
    $region45: #{dqn_forward.1} parent=1 // pred_fallthru
      _
    %308 = vsyncpa [#allocation3], 1
    %309 = vsyncpa [#allocation5], 1

</llo_original>
